<compile_context>
chip_gen: v5e
topology: v5e:2x2
jax: 0.10.0
libtpu: 0.0.40
codegen_flags: <defaults>
</compile_context>

<pallas_src>
import jax
import jax.numpy as jnp
from jax import lax
from jax.experimental import pallas as pl
from jax.experimental.pallas import tpu as pltpu


def pooler_kernel(x_ref, wt_ref, b_ref, o_ref):
    # x_ref : (TB, H)  CLS-token tile in the hidden_states dtype
    # wt_ref: (H, H)   weight, pre-transposed to [in, out] (K-major)
    # b_ref : (1, H)   bias, f32
    # o_ref : (TB, H)  pooled output tile
    x = x_ref[...].astype(wt_ref.dtype)  # cast to matmul dtype in-kernel (VPU)
    # Plain [M,K] x [K,N] MXU matmul with f32 accumulation; no transpose.
    y = lax.dot_general(
        x, wt_ref[...],
        dimension_numbers=(((1,), (0,)), ((), ())),
        preferred_element_type=jnp.float32,
    )
    o_ref[...] = jnp.tanh(y + b_ref[...].astype(jnp.float32)).astype(o_ref.dtype)


def prepare_psbert_pooler_params(weight, bias, *, compute_dtype=jnp.bfloat16):
    """One-time parameter prep (do this at model init / param load, NOT per call).

    weight: [H, H] in PyTorch nn.Linear layout (out_features, in_features).
    Returns (wt, b2): wt = weight.T as [in, out] in `compute_dtype` (native MXU
    RHS layout), b2 = bias as [1, H] f32.  compute_dtype=bfloat16 rounds the
    weights (and, in-kernel, the activations); use jnp.float32 for exact math.
    """
    wt = jnp.asarray(weight).T.astype(compute_dtype)
    b2 = jnp.asarray(bias).astype(jnp.float32).reshape(1, -1)
    return wt, b2


def _round_up(x, m):
    return ((x + m - 1) // m) * m


def _choose_batch_tile(batch, block_b):
    if batch < 16:
        return batch  # single full-batch tile (block == full dim is layout-legal)
    # >= 2 tiles so v7x's two TensorCores both get work; multiple of 8 sublanes.
    return min(block_b, _round_up(pl.cdiv(batch, 2), 8))


def psbert_pooler(hidden_states, wt, b2, *, block_b=512, out_dtype=None):
    """hidden_states: [B, S, H]; (wt, b2) from prepare_psbert_pooler_params."""
    B, S, H = hidden_states.shape
    out_dtype = hidden_states.dtype if out_dtype is None else jnp.dtype(out_dtype)
    tb = _choose_batch_tile(B, block_b)
    grid = (pl.cdiv(B, tb),)

    # Fused CLS gather: view [B, S, H] as [B, S*H] (free contiguous reshape) and
    # let the (tb, H) block at column-block 0 select hidden_states[:, 0, :] via
    # an auto-pipelined strided DMA (row stride S*H).  Needs the lane dim to be
    # a multiple of 128 or the full minor extent.
    if H % 128 == 0 or S == 1:
        x = hidden_states.reshape(B, S * H)
    else:
        x = hidden_states[:, 0, :]  # small / unaligned-H fallback (wrapper slice)

    x_b = jnp.dtype(x.dtype).itemsize
    w_b = jnp.dtype(wt.dtype).itemsize
    o_b = out_dtype.itemsize
    cost = pl.CostEstimate(
        flops=2 * B * H * H,
        transcendentals=B * H,
        bytes_accessed=(B * H * x_b        # CLS rows: single HBM trip
                        + H * H * w_b      # weight: resident, read once
                        + H * 4            # bias
                        + B * H * o_b),    # pooled output
    )

    return pl.pallas_call(
        pooler_kernel,
        out_shape=jax.ShapeDtypeStruct((B, H), out_dtype),
        grid=grid,
        in_specs=[
            pl.BlockSpec((tb, H), lambda i: (i, 0)),  # x: streamed over batch
            pl.BlockSpec((H, H), lambda i: (0, 0)),   # W^T: resident in VMEM
            pl.BlockSpec((1, H), lambda i: (0, 0)),   # bias: resident
        ],
        out_specs=pl.BlockSpec((tb, H), lambda i: (i, 0)),
        compiler_params=pltpu.CompilerParams(
            dimension_semantics=("parallel",)),
        cost_estimate=cost,
    )(x, wt, b2)


if __name__ == "__main__":
    def reference(hidden_states, weight, bias, compute_dtype):
        x = hidden_states[:, 0, :].astype(compute_dtype).astype(jnp.float32)
        w = weight.astype(compute_dtype).astype(jnp.float32)
        return jnp.tanh(x @ w.T + bias.astype(jnp.float32))

    key = jax.random.PRNGKey(0)
    k1, k2, k3, k4, k5, k6 = jax.random.split(key, 6)

    # --- Test 1: tiny shapes consistent with the module forward
    #     (H=32 not 128-aligned -> wrapper-side CLS slice path).
    B, S, H = 2, 8, 32
    hidden_states = jax.random.normal(k1, (B, S, H), dtype=jnp.float32)
    weight = jax.random.normal(k2, (H, H), dtype=jnp.float32) * 0.02
    bias = jax.random.normal(k3, (H,), dtype=jnp.float32) * 0.02

    wt, b2 = prepare_psbert_pooler_params(weight, bias)     # one-time prep
    out = jax.block_until_ready(psbert_pooler(hidden_states, wt, b2))

    assert out.shape == (B, H) and out.dtype == hidden_states.dtype
    ref_bf16 = reference(hidden_states, weight, bias, jnp.bfloat16)
    assert jnp.allclose(out, ref_bf16, atol=2e-3, rtol=2e-3)
    ref_f32 = jnp.tanh(hidden_states[:, 0, :] @ weight.T + bias)
    assert jnp.allclose(out, ref_f32, atol=5e-2, rtol=5e-2)

    # --- Test 2: 128-aligned hidden size + batch not a multiple of the tile
    #     (fused in-kernel CLS gather, 2 grid tiles, masked last tile).
    B, S, H = 20, 4, 256
    hidden_states = jax.random.normal(k4, (B, S, H), dtype=jnp.float32)
    weight = jax.random.normal(k5, (H, H), dtype=jnp.float32) * 0.02
    bias = jax.random.normal(k6, (H,), dtype=jnp.float32) * 0.02

    wt, b2 = prepare_psbert_pooler_params(weight, bias)
    out = jax.block_until_ready(psbert_pooler(hidden_states, wt, b2))

    assert out.shape == (B, H) and out.dtype == hidden_states.dtype
    ref_bf16 = reference(hidden_states, weight, bias, jnp.bfloat16)
    assert jnp.allclose(out, ref_bf16, atol=2e-3, rtol=2e-3)

    print("KERNEL_OK")
</pallas_src>

<mosaic_0001>
module attributes {stable_mosaic.version = 11 : i64} {
  func.func @pooler_kernel(%arg0: i32, %arg1: memref<2x32xf32, #tpu.memory_space<vmem>>, %arg2: memref<32x32xbf16, #tpu.memory_space<vmem>>, %arg3: memref<1x32xf32, #tpu.memory_space<vmem>>, %arg4: memref<2x32xf32, #tpu.memory_space<vmem>>) attributes {dimension_semantics = [#tpu.dimension_semantics<parallel>], iteration_bounds = array<i64: 1>, scalar_prefetch = 0 : i64, scratch_operands = 0 : i64, tpu.core_type = #tpu.core_type<tc>, window_params = [{transform_indices = @transform_0, window_bounds = array<i64: 2, 32>}, {pipeline_mode = #tpu.pipeline_mode<synchronous>, transform_indices = @transform_1, window_bounds = array<i64: 32, 32>}, {pipeline_mode = #tpu.pipeline_mode<synchronous>, transform_indices = @transform_2, window_bounds = array<i64: 1, 32>}, {transform_indices = @transform_3, window_bounds = array<i64: 2, 32>}]} {
    %c0 = arith.constant 0 : index
    %c0_0 = arith.constant 0 : index
    %0 = vector.load %arg1[%c0, %c0_0] : memref<2x32xf32, #tpu.memory_space<vmem>>, vector<2x32xf32>
    %1 = arith.truncf %0 : vector<2x32xf32> to vector<2x32xbf16>
    %c0_1 = arith.constant 0 : index
    %c0_2 = arith.constant 0 : index
    %2 = vector.load %arg2[%c0_1, %c0_2] : memref<32x32xbf16, #tpu.memory_space<vmem>>, vector<32x32xbf16>
    %cst = arith.constant dense<0.000000e+00> : vector<2x32xf32>
    %3 = tpu.matmul %1, %2, %cst {dimension_numbers = #tpu.dot_dimension_numbers<[1], [0], [0], [1], [0, 0, 1, 1], [], []>} : vector<2x32xbf16>, vector<32x32xbf16>, vector<2x32xf32> -> vector<2x32xf32>
    %c0_3 = arith.constant 0 : index
    %c0_4 = arith.constant 0 : index
    %4 = vector.load %arg3[%c0_3, %c0_4] : memref<1x32xf32, #tpu.memory_space<vmem>>, vector<1x32xf32>
    %5 = vector.broadcast %4 : vector<1x32xf32> to vector<2x32xf32>
    %6 = arith.addf %3, %5 : vector<2x32xf32>
    %7 = math.tanh %6 : vector<2x32xf32>
    %c0_5 = arith.constant 0 : index
    %c0_6 = arith.constant 0 : index
    %8 = vector.load %arg4[%c0_5, %c0_6] : memref<2x32xf32, #tpu.memory_space<vmem>>, vector<2x32xf32>
    tpu.vector_store %arg4[%c0_5, %c0_6], %7 {strides = array<i32>} : memref<2x32xf32, #tpu.memory_space<vmem>>, vector<2x32xf32>,
    return
  }
  func.func @transform_0(%arg0: i32) -> (i32, i32) {
    %c0_i32 = arith.constant 0 : i32
    %c0_i32_0 = arith.constant 0 : i32
    return %arg0, %c0_i32 : i32, i32
  }
  func.func @transform_1(%arg0: i32) -> (i32, i32) {
    %c0_i32 = arith.constant 0 : i32
    %c0_i32_0 = arith.constant 0 : i32
    %c0_i32_1 = arith.constant 0 : i32
    return %c0_i32, %c0_i32_0 : i32, i32
  }
  func.func @transform_2(%arg0: i32) -> (i32, i32) {
    %c0_i32 = arith.constant 0 : i32
    %c0_i32_0 = arith.constant 0 : i32
    %c0_i32_1 = arith.constant 0 : i32
    return %c0_i32, %c0_i32_0 : i32, i32
  }
  func.func @transform_3(%arg0: i32) -> (i32, i32) {
    %c0_i32 = arith.constant 0 : i32
    %c0_i32_0 = arith.constant 0 : i32
    return %arg0, %c0_i32 : i32, i32
  }
}

</mosaic_0001>

<llo_original>
// kernel: tpu_custom_call.1
$region0: #{tpu_custom_call.1}
  #allocation0 [shape = 'u32[]', space=smem, size = 0x4, offset = 0x4, fixed_abs, tag = 'smem constant byte address 0x4 - core index']
  #allocation1 [shape = 'u32[72,128]{1,0:T(1,128)}', space=vmem, size = 0x9000, scoped, tag = 'internal scratch']
  %s0 = inlined_call_operand.hbm [shape: f32[2,32], index: 0, kind: input, shape index: {}]
  %s1 = inlined_call_operand.hbm [shape: bf16[32,32], index: 1, kind: input, shape index: {}]
  %s2 = inlined_call_operand.vmem [shape: f32[1,32], index: 2, kind: input, shape index: {}]
  %s3 = inlined_call_operand.hbm [shape: f32[2,32], index: 3, kind: output, shape index: {}]
  %s4 = sld [smem:[#allocation0]]
  $region30: #{tpu_custom_call.1} parent=0
    _
  %s6 = ssub.s32 1, %s4
  %s7 = scalar_select 0, %s6, %s4
  $region1: #{tpu_custom_call.1} parent=0
    #allocation2 [shape = 'u8[1024]{0}', space=vmem, size = 0x400, scoped, tag = 'input window, operand 0, single buffered']
    #allocation3 [shape = 's32[1]{0}', space=sflag, size = 0x4, scoped, tag = 'scoped memory for tpu_custom_call.1']
    #allocation4 [shape = 's32[1]{0}', space=sflag, size = 0x4, scoped, tag = 'scoped memory for tpu_custom_call.1']
    #allocation5 [shape = 'u8[8192]{0}', space=vmem, size = 0x2000, scoped, tag = 'input window, operand 1, single buffered']
    #allocation6 [shape = 's32[1]{0}', space=sflag, size = 0x4, scoped, tag = 'scoped memory for tpu_custom_call.1']
    #allocation7 [shape = 'u8[1024]{0}', space=vmem, size = 0x400, scoped, tag = 'output window, operand 0, single buffered']
    %8 = vsyncpa [#allocation3], 0
    %9 = vsyncpa [#allocation6], 0
    %10 = vsyncpa [#allocation4], 0
    // Predicated region
    $region2: #{tpu_custom_call.1} parent=1 // pred_check
      _
    $region3: #{tpu_custom_call.1} parent=1 // pred_check_branch
      %12 = sbr.rel (0) target = $region5
    $region4: #{tpu_custom_call.1} parent=1 // pred_region
      %14 = vsyncadd [#allocation3], 0
      %s16 = sshll.u32 %s0, 4
      %s17 = int_to_ptr.hbm [resolvable:$true] %s16
      %s18 = sshll.u32 [#allocation2], 4
      %s19 = int_to_ptr.vmem [resolvable:$true] %s18
      %21 = dma.hbm_to_vmem [thread:$0]  %s17, 32, %s19, [#allocation3]
    $region5: #{tpu_custom_call.1} parent=1 // pred_fallthru
      _
    // Predicated region
    $region6: #{tpu_custom_call.1} parent=1 // pred_check
      _
    $region7: #{tpu_custom_call.1} parent=1 // pred_check_branch
      %23 = sbr.rel (0) target = $region9
    $region8: #{tpu_custom_call.1} parent=1 // pred_region
      %25 = vsyncadd [#allocation6], 0
      %s26 = sshll.u32 %s1, 4
      %s27 = int_to_ptr.hbm [resolvable:$true] %s26
      %s28 = sshll.u32 [#allocation5], 4
      %s29 = int_to_ptr.vmem [resolvable:$true] %s28
      %34 = dma.hbm_to_vmem [thread:$0]  %s27, 256, %s29, [#allocation6], 64, 64, 4
    $region9: #{tpu_custom_call.1} parent=1 // pred_fallthru
      _
    // Predicated region
    $region10: #{tpu_custom_call.1} parent=1 // pred_check
      _
    $region11: #{tpu_custom_call.1} parent=1 // pred_check_branch
      %36 = sbr.rel (0) target = $region13
    $region12: #{tpu_custom_call.1} parent=1 // pred_region
      _
    $region13: #{tpu_custom_call.1} parent=1 // pred_fallthru
      _
    // Predicated region
    $region14: #{tpu_custom_call.1} parent=1 // pred_check
      _
    $region15: #{tpu_custom_call.1} parent=1 // pred_check_branch
      %38 = sbr.rel (0) target = $region17
    $region16: #{tpu_custom_call.1} parent=1 // pred_region
      %40 = dma.done [#allocation3], 32
    $region17: #{tpu_custom_call.1} parent=1 // pred_fallthru
      _
    // Predicated region
    $region18: #{tpu_custom_call.1} parent=1 // pred_check
      _
    $region19: #{tpu_custom_call.1} parent=1 // pred_check_branch
      %42 = sbr.rel (0) target = $region21
    $region20: #{tpu_custom_call.1} parent=1 // pred_region
      %44 = dma.done [#allocation6], 256
    $region21: #{tpu_custom_call.1} parent=1 // pred_fallthru
      _
    %v46 = vld [vmem:[#allocation2] sm:$0x3]
    %v47 = vpack.c.bf16 %v46, %v46
    %v48 = vld [vmem:[#allocation5] sm:$0xf]
    %v49 = vld [vmem:[#allocation5 + $0x4] sm:$0xf]
    %v50 = vld [vmem:[#allocation5 + $0x8] sm:$0xf]
    %v51 = vld [vmem:[#allocation5 + $0xc] sm:$0xf]
    %v52 = vld [vmem:[%s2] sm:$0x1]
    %v54 = vperm.slane %v52, 0
    %v60 = vunpack.c.l.b16 %v48
    %v61 = vunpack.c.l.b16 %v49
    %v62 = vunpack.c.l.b16 %v50
    %v63 = vunpack.c.l.b16 %v51
    %v64 = vpack.c.b16 %v61, %v60
    %v65 = vpack.c.b16 %v63, %v62
    %vm68 = vcmask 261120
    %v70 = vsel %vm68, %v47, 0
    %72 = vmatpush.bf16.msra.mxu0 0
    %73 = vmatpush.bf16.msra.mxu0 0
    %74 = vmatpush.bf16.msra.mxu0 0
    %75 = vmatpush.bf16.msra.mxu0 0
    %76 = vmatpush.bf16.msra.mxu0 0
    %77 = vmatpush.bf16.msra.mxu0 0
    %78 = vmatpush.bf16.msra.mxu0 %v65
    %79 = vmatpush.bf16.msra.mxu0 %v64
    %80 = vmatmul.bf16.gmra.mxu0 %v70
    %v81 = vpop.f32.mrf.mxu0
    %v82 = vadd.f32 %v54, %v81
    %v83 = vpop.f32.mrf.mxu0
    %84 = vdwg.mxu0
    %v85 = vtanh.pop %v82
    %vm86 = vcmask 254976
    %87 = vst.msk [vmem:[#allocation7] sm:$0x3] %vm86, %v85
    // Predicated region
    $region22: #{tpu_custom_call.1} parent=1 // pred_check
      _
    $region23: #{tpu_custom_call.1} parent=1 // pred_check_branch
      %89 = sbr.rel (0) target = $region25
    $region24: #{tpu_custom_call.1} parent=1 // pred_region
      %91 = vsyncadd [#allocation4], 0
      %s93 = sshll.u32 [#allocation7], 4
      %s94 = int_to_ptr.vmem [resolvable:$true] %s93
      %s95 = sshll.u32 %s3, 4
      %s96 = int_to_ptr.hbm [resolvable:$true] %s95
      %98 = dma.vmem_to_hbm [thread:$0]  %s94, 32, %s96, [#allocation4]
    $region25: #{tpu_custom_call.1} parent=1 // pred_fallthru
      _
    // Predicated region
    $region26: #{tpu_custom_call.1} parent=1 // pred_check
      _
    $region27: #{tpu_custom_call.1} parent=1 // pred_check_branch
      %100 = sbr.rel (0) target = $region29
    $region28: #{tpu_custom_call.1} parent=1 // pred_region
      %102 = dma.done [#allocation4], 32
    $region29: #{tpu_custom_call.1} parent=1 // pred_fallthru
      _
    %103 = vsyncpa [#allocation3], 1
    %104 = vsyncpa [#allocation6], 1
    %105 = vsyncpa [#allocation4], 1

</llo_original>
